<compile_context>
chip_gen: v5e
topology: v5e:2x2
jax: 0.10.0
libtpu: 0.0.40
codegen_flags: <defaults>
</compile_context>

<pallas_src>
import functools

import jax
import jax.numpy as jnp
from jax.experimental import pallas as pl
from jax.experimental.pallas import tpu as pltpu

EPS = 1e-5
_MIB = 1024 * 1024
_ROW_TILE = 1024  # two-pass row tile


def _vmem_capacity_bytes():
    try:
        cap = int(pltpu.get_tpu_info().vmem_capacity_bytes)
        if cap > 0:
            return cap
    except Exception:
        pass
    return 64 * _MIB  # conservative default (v7x per-core VMEM)


def _fold(v, start_shift):
    """Sum lanes of a (1, 128) vector whose indices agree mod `start_shift`.

    After folding, every lane holds the total for its feature (lane % d).
    start_shift divides 128, so the doubling rolls cover each residue class
    exactly once."""
    shift = start_shift
    while shift < 128:
        v = v + pltpu.roll(v, shift, axis=1)
        shift *= 2
    return v


# --------------------------------------------------------------------------
# Kernels
# --------------------------------------------------------------------------
def _seqbn_onepass_kernel(x_ref, gamma_ref, beta_ref, o_ref, *, inv_n, fold_d):
    """Whole (rows, bd) column resident in VMEM: stats + normalize in one read."""
    x = x_ref[...].astype(jnp.float32)                      # (rows, bd)
    s = jnp.sum(x, axis=0, keepdims=True)                   # (1, bd)
    sq = jnp.sum(x * x, axis=0, keepdims=True)              # (1, bd)
    if fold_d:                                              # lane-folded small-d view
        s = _fold(s, fold_d)
        sq = _fold(sq, fold_d)
    mean = s * inv_n
    # Biased variance via E[x^2] - mean^2 (mild cancellation risk for
    # |mean| >> std; acceptable for activation-scale data).
    var = jnp.maximum(sq * inv_n - mean * mean, 0.0)
    a = jax.lax.rsqrt(var + EPS) * gamma_ref[...]           # (1, bd)
    b = beta_ref[...] - mean * a                            # (1, bd)
    o_ref[...] = (x * a + b).astype(o_ref.dtype)


def _seqbn_stats_kernel(x_ref, gamma_ref, beta_ref, a_ref, b_ref,
                        sum_ref, sq_ref, *, inv_n, fold_d, n_rows, row_tile):
    """Pass 1: accumulate sum / sum-of-squares over row tiles, finalize a, b."""
    i = pl.program_id(1)  # row-tile index (reduction axis, last in grid)

    @pl.when(i == 0)
    def _():
        sum_ref[...] = jnp.zeros_like(sum_ref)
        sq_ref[...] = jnp.zeros_like(sq_ref)

    x = x_ref[...].astype(jnp.float32)                      # (bn, bd)
    if n_rows % row_tile != 0:
        # Ragged final row tile: zero out rows past the true extent so the
        # garbage in the out-of-bounds block region never enters the sums.
        row_ids = jax.lax.broadcasted_iota(jnp.int32, x.shape, 0) + i * row_tile
        x = jnp.where(row_ids < n_rows, x, 0.0)
    sum_ref[...] += jnp.sum(x, axis=0, keepdims=True)
    sq_ref[...] += jnp.sum(x * x, axis=0, keepdims=True)

    @pl.when(i == pl.num_programs(1) - 1)
    def _():
        s = sum_ref[...]
        sq = sq_ref[...]
        if fold_d:
            s = _fold(s, fold_d)
            sq = _fold(sq, fold_d)
        mean = s * inv_n
        var = jnp.maximum(sq * inv_n - mean * mean, 0.0)
        a = jax.lax.rsqrt(var + EPS) * gamma_ref[...]
        a_ref[...] = a
        b_ref[...] = beta_ref[...] - mean * a


def _seqbn_norm_kernel(x_ref, a_ref, b_ref, o_ref):
    """Pass 2: y = x * a + b (fully parallel)."""
    x = x_ref[...].astype(jnp.float32)
    o_ref[...] = (x * a_ref[...] + b_ref[...]).astype(o_ref.dtype)


# --------------------------------------------------------------------------
# Wrappers
# --------------------------------------------------------------------------
def seqbn_flat(flat_x, gamma, beta, *, max_onepass_bytes=None):
    """BatchNorm1d (training-mode batch stats) on an (N, D) matrix via Pallas."""
    n, d = flat_x.shape
    in_bytes = jnp.dtype(flat_x.dtype).itemsize
    out_dtype = flat_x.dtype

    vmem_cap = _vmem_capacity_bytes()
    multi_core = vmem_cap <= 96 * _MIB            # v7x-style: 2 TCs, 64 MiB VMEM
    budget = int(0.40 * vmem_cap)                 # per-pass block budget
    onepass_budget = budget if max_onepass_bytes is None else int(max_onepass_bytes)
    limit_cap = min(int(0.75 * vmem_cap), 100 * _MIB)

    def vmem_limit(footprint):
        return int(min(max(footprint + footprint // 4 + 4 * _MIB, 16 * _MIB),
                       limit_cap))

    # ---- lane-dense view for small d_model: no padding, no slicing ----
    fold_d = 0
    xv = flat_x
    gvec = gamma.astype(jnp.float32)
    bvec = beta.astype(jnp.float32)
    if d < 128 and 128 % d == 0 and (n * d) % 128 == 0:
        fold_d = d
        reps = 128 // d
        xv = flat_x.reshape((n * d) // 128, 128)   # free row-major reinterpretation
        gvec = jnp.tile(gvec, reps)                # tiny (128,) vectors
        bvec = jnp.tile(bvec, reps)
    rows, dv = xv.shape
    gamma2 = gvec.reshape(1, dv)
    beta2 = bvec.reshape(1, dv)
    inv_n = 1.0 / float(n)

    # ---- feature-tile candidates (lane-dense, descending) ----
    if dv < 128:
        bd_candidates = [dv]                       # full-extent (masked-lane) block
    else:
        lane_tiles = dv // 128
        max_tiles = min(lane_tiles, 2048 // 128)   # cap block width at 2048 lanes
        if multi_core and lane_tiles >= 2:
            # keep >= 2 feature tiles so both TensorCores get "parallel" work
            max_tiles = min(max_tiles, max(1, lane_tiles // 2))
        bd_candidates = [t * 128 for t in range(max_tiles, 0, -1)]

    # -------- one-pass path (2 HBM passes: read x once, write y once) --------
    per_elem_onepass = 4 * in_bytes + 8   # x/out double-buffered + f32 temporaries
    onepass_bd = None
    for cand in bd_candidates:
        if rows * cand * per_elem_onepass <= onepass_budget:
            onepass_bd = cand
            break

    if onepass_bd is not None:
        bd = onepass_bd
        kernel = functools.partial(_seqbn_onepass_kernel, inv_n=inv_n, fold_d=fold_d)
        out = pl.pallas_call(
            kernel,
            out_shape=jax.ShapeDtypeStruct((rows, dv), out_dtype),
            grid_spec=pltpu.PrefetchScalarGridSpec(
                num_scalar_prefetch=0,
                grid=(pl.cdiv(dv, bd),),
                in_specs=[
                    pl.BlockSpec((rows, bd), lambda j: (0, j)),   # x: all rows
                    pl.BlockSpec((1, bd), lambda j: (0, j)),      # gamma
                    pl.BlockSpec((1, bd), lambda j: (0, j)),      # beta
                ],
                out_specs=pl.BlockSpec((rows, bd), lambda j: (0, j)),
            ),
            compiler_params=pltpu.CompilerParams(
                dimension_semantics=("parallel",),
                vmem_limit_bytes=vmem_limit(rows * bd * per_elem_onepass),
            ),
        )(xv, gamma2, beta2)
        return out.reshape(n, d)

    # -------- two-pass path (row-tiled stats accumulate, then normalize) -----
    bn = _ROW_TILE if rows >= _ROW_TILE else rows
    per_elem_norm = 4 * in_bytes + 8      # x/out double-buffered + f32 temps
    bd = bd_candidates[-1]
    for cand in bd_candidates:
        if bn * cand * per_elem_norm <= budget:
            bd = cand
            break

    grid = (pl.cdiv(dv, bd), pl.cdiv(rows, bn))   # features parallel, rows last

    stats_kernel = functools.partial(
        _seqbn_stats_kernel, inv_n=inv_n, fold_d=fold_d, n_rows=rows, row_tile=bn)
    a_vec, b_vec = pl.pallas_call(
        stats_kernel,
        out_shape=(jax.ShapeDtypeStruct((1, dv), jnp.float32),
                   jax.ShapeDtypeStruct((1, dv), jnp.float32)),
        grid_spec=pltpu.PrefetchScalarGridSpec(
            num_scalar_prefetch=0,
            grid=grid,
            in_specs=[
                pl.BlockSpec((bn, bd), lambda j, i: (i, j)),      # x row tile
                pl.BlockSpec((1, bd), lambda j, i: (0, j)),       # gamma
                pl.BlockSpec((1, bd), lambda j, i: (0, j)),       # beta
            ],
            out_specs=[
                pl.BlockSpec((1, bd), lambda j, i: (0, j)),       # a = inv_std*gamma
                pl.BlockSpec((1, bd), lambda j, i: (0, j)),       # b = beta - mean*a
            ],
            scratch_shapes=[pltpu.VMEM((1, bd), jnp.float32),     # running sum
                            pltpu.VMEM((1, bd), jnp.float32)],    # running sumsq
        ),
        compiler_params=pltpu.CompilerParams(
            dimension_semantics=("parallel", "arbitrary"),
            vmem_limit_bytes=vmem_limit(bn * bd * (2 * in_bytes + 8)),
        ),
    )(xv, gamma2, beta2)

    out = pl.pallas_call(
        _seqbn_norm_kernel,
        out_shape=jax.ShapeDtypeStruct((rows, dv), out_dtype),
        grid_spec=pltpu.PrefetchScalarGridSpec(
            num_scalar_prefetch=0,
            grid=grid,
            in_specs=[
                pl.BlockSpec((bn, bd), lambda j, i: (i, j)),      # x row tile
                pl.BlockSpec((1, bd), lambda j, i: (0, j)),       # a
                pl.BlockSpec((1, bd), lambda j, i: (0, j)),       # b
            ],
            out_specs=pl.BlockSpec((bn, bd), lambda j, i: (i, j)),
        ),
        compiler_params=pltpu.CompilerParams(
            dimension_semantics=("parallel", "parallel"),
            vmem_limit_bytes=vmem_limit(bn * bd * per_elem_norm),
        ),
    )(xv, a_vec, b_vec)
    return out.reshape(n, d)


def seqbn(x, gamma, beta, *, max_onepass_bytes=None):
    """SeqBN.forward: flatten to (-1, d_model), BN over batch dim, reshape back."""
    d_model = x.shape[-1]
    assert gamma.shape == (d_model,) and beta.shape == (d_model,)
    flat_x = x.reshape(-1, d_model)
    flat_y = seqbn_flat(flat_x, gamma, beta, max_onepass_bytes=max_onepass_bytes)
    return flat_y.reshape(x.shape)


# --------------------------------------------------------------------------
# Reference + test
# --------------------------------------------------------------------------
def _reference(x, gamma, beta):
    d = x.shape[-1]
    flat = x.reshape(-1, d).astype(jnp.float32)
    mean = jnp.mean(flat, axis=0, keepdims=True)
    var = jnp.mean((flat - mean) ** 2, axis=0, keepdims=True)
    y = (flat - mean) / jnp.sqrt(var + EPS) * gamma + beta
    return y.reshape(x.shape).astype(x.dtype)


if __name__ == "__main__":
    key = jax.random.PRNGKey(0)
    k1, k2, k3, k4, k5 = jax.random.split(key, 5)

    fn = jax.jit(seqbn)
    fn_two_pass = jax.jit(functools.partial(seqbn, max_onepass_bytes=1))

    def check(out, x, gamma, beta, tag):
        ref = _reference(x, gamma, beta)
        assert out.shape == x.shape and out.dtype == x.dtype, tag
        assert jnp.allclose(out, ref, atol=5e-4, rtol=5e-4), f"mismatch ({tag})"

    # 1) small d_model=32: lane-folded (N*d/128, 128) one-pass path, no padding
    b, s, dm = 2, 8, 32
    x = jax.random.normal(k1, (b, s, dm), dtype=jnp.float32)
    g = 1.0 + 0.1 * jax.random.normal(k2, (dm,), dtype=jnp.float32)
    bt = 0.1 * jax.random.normal(k3, (dm,), dtype=jnp.float32)
    check(jax.block_until_ready(fn(x, g, bt)), x, g, bt, "folded one-pass")

    # 2) d_model=192 (not a multiple of 128): ragged feature tiles, no padding
    b2, s2, dm2 = 2, 100, 192
    x2 = jax.random.normal(k4, (b2, s2, dm2), dtype=jnp.float32)
    g2 = 1.0 + 0.1 * jax.random.normal(k2, (dm2,), dtype=jnp.float32)
    bt2 = 0.1 * jax.random.normal(k3, (dm2,), dtype=jnp.float32)
    check(jax.block_until_ready(fn(x2, g2, bt2)), x2, g2, bt2, "ragged-lane one-pass")

    # 3) forced two-pass with ragged row tiles (N=1536, row tile 1024 + mask)
    b3, s3, dm3 = 3, 512, 256
    x3 = jax.random.normal(k5, (b3, s3, dm3), dtype=jnp.float32)
    g3 = 1.0 + 0.1 * jax.random.normal(k2, (dm3,), dtype=jnp.float32)
    bt3 = 0.1 * jax.random.normal(k3, (dm3,), dtype=jnp.float32)
    check(jax.block_until_ready(fn_two_pass(x3, g3, bt3)), x3, g3, bt3, "two-pass")

    # 4) forced two-pass on the lane-folded view (fold at stats finalize)
    b4, s4, dm4 = 4, 8, 32
    x4 = jax.random.normal(k1, (b4, s4, dm4), dtype=jnp.float32)
    g4 = 1.0 + 0.1 * jax.random.normal(k2, (dm4,), dtype=jnp.float32)
    bt4 = 0.1 * jax.random.normal(k3, (dm4,), dtype=jnp.float32)
    check(jax.block_until_ready(fn_two_pass(x4, g4, bt4)), x4, g4, bt4, "folded two-pass")

    print("KERNEL_OK")
</pallas_src>

<mosaic_0001>
module attributes {stable_mosaic.version = 11 : i64} {
  func.func @_seqbn_onepass_kernel(%arg0: i32, %arg1: memref<4x128xf32, #tpu.memory_space<vmem>>, %arg2: memref<1x128xf32, #tpu.memory_space<vmem>>, %arg3: memref<1x128xf32, #tpu.memory_space<vmem>>, %arg4: memref<4x128xf32, #tpu.memory_space<vmem>>) attributes {dimension_semantics = [#tpu.dimension_semantics<parallel>], iteration_bounds = array<i64: 1>, scalar_prefetch = 0 : i64, scratch_operands = 0 : i64, tpu.core_type = #tpu.core_type<tc>, window_params = [{transform_indices = @transform_0, window_bounds = array<i64: 4, 128>}, {transform_indices = @transform_1, window_bounds = array<i64: 1, 128>}, {transform_indices = @transform_2, window_bounds = array<i64: 1, 128>}, {transform_indices = @transform_3, window_bounds = array<i64: 4, 128>}]} {
    %c0 = arith.constant 0 : index
    %c0_0 = arith.constant 0 : index
    %0 = vector.load %arg1[%c0, %c0_0] : memref<4x128xf32, #tpu.memory_space<vmem>>, vector<4x128xf32>
    %cst = arith.constant dense<0.000000e+00> : vector<128xf32>
    %1 = vector.multi_reduction <add>, %0, %cst [0] : vector<4x128xf32> to vector<128xf32>
    %2 = vector.shape_cast %1 : vector<128xf32> to vector<1x128xf32>
    %3 = arith.mulf %0, %0 : vector<4x128xf32>
    %cst_1 = arith.constant dense<0.000000e+00> : vector<128xf32>
    %4 = vector.multi_reduction <add>, %3, %cst_1 [0] : vector<4x128xf32> to vector<128xf32>
    %5 = vector.shape_cast %4 : vector<128xf32> to vector<1x128xf32>
    %c32_i32 = arith.constant 32 : i32
    %6 = tpu.dynamic_rotate %2 by %c32_i32 dim 1 : vector<1x128xf32>, i32 -> vector<1x128xf32>
    %7 = arith.addf %2, %6 : vector<1x128xf32>
    %c64_i32 = arith.constant 64 : i32
    %8 = tpu.dynamic_rotate %7 by %c64_i32 dim 1 : vector<1x128xf32>, i32 -> vector<1x128xf32>
    %9 = arith.addf %7, %8 : vector<1x128xf32>
    %c32_i32_2 = arith.constant 32 : i32
    %10 = tpu.dynamic_rotate %5 by %c32_i32_2 dim 1 : vector<1x128xf32>, i32 -> vector<1x128xf32>
    %11 = arith.addf %5, %10 : vector<1x128xf32>
    %c64_i32_3 = arith.constant 64 : i32
    %12 = tpu.dynamic_rotate %11 by %c64_i32_3 dim 1 : vector<1x128xf32>, i32 -> vector<1x128xf32>
    %13 = arith.addf %11, %12 : vector<1x128xf32>
    %cst_4 = arith.constant 6.250000e-02 : f32
    %14 = vector.broadcast %cst_4 : f32 to vector<1x128xf32>
    %15 = arith.mulf %9, %14 : vector<1x128xf32>
    %cst_5 = arith.constant 6.250000e-02 : f32
    %16 = vector.broadcast %cst_5 : f32 to vector<1x128xf32>
    %17 = arith.mulf %13, %16 : vector<1x128xf32>
    %18 = arith.mulf %15, %15 : vector<1x128xf32>
    %19 = arith.subf %17, %18 : vector<1x128xf32>
    %cst_6 = arith.constant 0.000000e+00 : f32
    %20 = vector.broadcast %cst_6 : f32 to vector<1x128xf32>
    %21 = arith.maximumf %19, %20 : vector<1x128xf32>
    %cst_7 = arith.constant 9.99999974E-6 : f32
    %22 = vector.broadcast %cst_7 : f32 to vector<1x128xf32>
    %23 = arith.addf %21, %22 : vector<1x128xf32>
    %24 = math.rsqrt %23 : vector<1x128xf32>
    %c0_8 = arith.constant 0 : index
    %c0_9 = arith.constant 0 : index
    %25 = vector.load %arg2[%c0_8, %c0_9] : memref<1x128xf32, #tpu.memory_space<vmem>>, vector<1x128xf32>
    %26 = arith.mulf %24, %25 : vector<1x128xf32>
    %c0_10 = arith.constant 0 : index
    %c0_11 = arith.constant 0 : index
    %27 = vector.load %arg3[%c0_10, %c0_11] : memref<1x128xf32, #tpu.memory_space<vmem>>, vector<1x128xf32>
    %28 = arith.mulf %15, %26 : vector<1x128xf32>
    %29 = arith.subf %27, %28 : vector<1x128xf32>
    %30 = vector.broadcast %26 : vector<1x128xf32> to vector<4x128xf32>
    %31 = arith.mulf %0, %30 : vector<4x128xf32>
    %32 = vector.broadcast %29 : vector<1x128xf32> to vector<4x128xf32>
    %33 = arith.addf %31, %32 : vector<4x128xf32>
    %c0_12 = arith.constant 0 : index
    %c0_13 = arith.constant 0 : index
    %34 = vector.load %arg4[%c0_12, %c0_13] : memref<4x128xf32, #tpu.memory_space<vmem>>, vector<4x128xf32>
    tpu.vector_store %arg4[%c0_12, %c0_13], %33 {strides = array<i32>} : memref<4x128xf32, #tpu.memory_space<vmem>>, vector<4x128xf32>,
    return
  }
  func.func @transform_0(%arg0: i32) -> (i32, i32) {
    %c0_i32 = arith.constant 0 : i32
    %c0_i32_0 = arith.constant 0 : i32
    return %c0_i32, %arg0 : i32, i32
  }
  func.func @transform_1(%arg0: i32) -> (i32, i32) {
    %c0_i32 = arith.constant 0 : i32
    %c0_i32_0 = arith.constant 0 : i32
    return %c0_i32, %arg0 : i32, i32
  }
  func.func @transform_2(%arg0: i32) -> (i32, i32) {
    %c0_i32 = arith.constant 0 : i32
    %c0_i32_0 = arith.constant 0 : i32
    return %c0_i32, %arg0 : i32, i32
  }
  func.func @transform_3(%arg0: i32) -> (i32, i32) {
    %c0_i32 = arith.constant 0 : i32
    %c0_i32_0 = arith.constant 0 : i32
    return %c0_i32, %arg0 : i32, i32
  }
}

</mosaic_0001>

<llo_original>
// kernel: tile.18
$region0: #{tile.18}
  %s0 = inlined_call_operand.vmem [shape: f32[4,32], index: 0, kind: input, shape index: {}]
  %s1 = inlined_call_operand.vmem [shape: f32[1,128], index: 1, kind: output, shape index: {}]
  $region1: #{tile.18} parent=0
    #allocation0 [shape = 'u8[4096]{0}', space=vmem, size = 0x1000, scoped, tag = 'scoped mem for output reshape']
    #allocation1 [shape = 'u8[4096]{0}', space=vmem, size = 0x1000, scoped, tag = 'scoped mem for input reshape']
    %s3 = ssub.s32 16, 1
    %v4 = vld [vmem:[%s0] sm:%s3]
    %5 = vst [vmem:[#allocation1] sm:%s3] %v4
    %v6 = vld [vmem:[#allocation1] sm:$0x1]
    %vm7 = vcmask 261120
    %8 = vst.msk [vmem:[#allocation0] sm:$0x1] %vm7, %v6
    %s9 = scalar_lea.vmem [#allocation1], 3
    %v10 = vld [vmem:[%s9] sm:$0x1]
    %11 = vrot.lane.b32.xlu0 %v10, 96
    %v12 = vpop.permute.xlu0 %11
    %vm13 = vcmask 1048320
    %14 = vst.msk [vmem:[#allocation0] sm:$0x1] %vm13, %v12
    %s15 = scalar_lea.vmem [#allocation1], 2
    %v16 = vld [vmem:[%s15] sm:$0x1]
    %17 = vrot.lane.b32.xlu0 %v16, 64
    %v18 = vpop.permute.xlu0 %17
    %vm19 = vcmask 785920
    %20 = vst.msk [vmem:[#allocation0] sm:$0x1] %vm19, %v18
    %s21 = scalar_lea.vmem [#allocation1], 1
    %v22 = vld [vmem:[%s21] sm:$0x1]
    %23 = vrot.lane.b32.xlu0 %v22, 32
    %v24 = vpop.permute.xlu0 %23
    %vm25 = vcmask 523520
    %26 = vst.msk [vmem:[#allocation0] sm:$0x1] %vm25, %v24
    %s28 = ssub.s32 2, 1
    %v29 = vld [vmem:[#allocation0] sm:%s28]
    %s31 = ssub.s32 2, 1
    %32 = vst [vmem:[%s1] sm:%s31] %v29

// kernel: tile.13
$region0: #{tile.13}
  #allocation0 [shape = 's32[1]{0}', space=sflag, size = 0x4, scoped, tag = 'scoped memory for tile.13']
  %s0 = inlined_call_operand.vmem [shape: f32[32], index: 0, kind: input, shape index: {}]
  %s1 = inlined_call_operand.vmem [shape: f32[4,32], index: 1, kind: output, shape index: {}]
  // Predicated region
  $region2: #{tile.13} parent=0 // pred_check
    _
  $region3: #{tile.13} parent=0 // pred_check_branch
    %3 = sbr.rel (0) target = $region5
  $region4: #{tile.13} parent=0 // pred_region
    _
  $region5: #{tile.13} parent=0 // pred_fallthru
    _
  %v4 = vld [vmem:[%s0] ss:$0 sm:$0xff]
  %5 = vst [vmem:[%s1] sm:$0xf] %v4

// kernel: seqbn.1
$region0: #{seqbn.1}
  #allocation0 [shape = 'u32[]', space=smem, size = 0x4, offset = 0x4, fixed_abs, tag = 'smem constant byte address 0x4 - core index']
  #allocation1 [shape = 'u32[72,128]{1,0:T(1,128)}', space=vmem, size = 0x9000, scoped, tag = 'internal scratch']
  %s0 = inlined_call_operand.vmem [shape: f32[4,128], index: 0, kind: input, shape index: {}]
  %s1 = inlined_call_operand.vmem [shape: f32[1,128], index: 1, kind: input, shape index: {}]
  %s2 = inlined_call_operand.vmem [shape: f32[1,128], index: 2, kind: input, shape index: {}]
  %s3 = inlined_call_operand.vmem [shape: f32[4,128], index: 3, kind: output, shape index: {}]
  %s4 = sld [smem:[#allocation0]]
  $region22: #{seqbn.1} parent=0
    _
  %s6 = ssub.s32 1, %s4
  %s7 = scalar_select 0, %s6, %s4
  // Predicated region
  $region2: #{seqbn.1} parent=0 // pred_check
    _
  $region3: #{seqbn.1} parent=0 // pred_check_branch
    %9 = sbr.rel (0) target = $region5
  $region4: #{seqbn.1} parent=0 // pred_region
    _
  $region5: #{seqbn.1} parent=0 // pred_fallthru
    _
  // Predicated region
  $region6: #{seqbn.1} parent=0 // pred_check
    _
  $region7: #{seqbn.1} parent=0 // pred_check_branch
    %11 = sbr.rel (0) target = $region9
  $region8: #{seqbn.1} parent=0 // pred_region
    _
  $region9: #{seqbn.1} parent=0 // pred_fallthru
    _
  // Predicated region
  $region10: #{seqbn.1} parent=0 // pred_check
    _
  $region11: #{seqbn.1} parent=0 // pred_check_branch
    %13 = sbr.rel (0) target = $region13
  $region12: #{seqbn.1} parent=0 // pred_region
    _
  $region13: #{seqbn.1} parent=0 // pred_fallthru
    _
  %v14 = vld [vmem:[%s0] sm:$0xf]
  %vm15 = vcmask 1043456
  %v16 = vsel %vm15, %v14, 0.0
  %v17 = vrot.slane %v16, 4
  %v18 = vadd.f32 %v16, %v17
  %v19 = vrot.slane %v18, 2
  %v20 = vadd.f32 %v18, %v19
  %v21 = vrot.slane %v20, 1
  %v22 = vadd.f32 %v20, %v21
  %v23 = vmul.f32 %v14, %v14
  %v24 = vsel %vm15, %v23, 0.0
  %v25 = vrot.slane %v24, 4
  %v26 = vadd.f32 %v24, %v25
  %v27 = vrot.slane %v26, 2
  %v28 = vadd.f32 %v26, %v27
  %v29 = vrot.slane %v28, 1
  %v30 = vadd.f32 %v28, %v29
  %31 = vrot.lane.b32.xlu0 %v22, 32
  %v32 = vpop.permute.xlu0 %31
  %v33 = vadd.f32 %v22, %v32
  %34 = vrot.lane.b32.xlu0 %v33, 64
  %v35 = vpop.permute.xlu0 %34
  %v36 = vadd.f32 %v33, %v35
  %37 = vrot.lane.b32.xlu0 %v30, 32
  %v38 = vpop.permute.xlu0 %37
  %v39 = vadd.f32 %v30, %v38
  %40 = vrot.lane.b32.xlu0 %v39, 64
  %v41 = vpop.permute.xlu0 %40
  %v42 = vadd.f32 %v39, %v41
  %v43 = vmul.f32 %v36, 0.0625
  %v44 = vmul.f32 %v42, 0.0625
  %v45 = vmul.f32 %v43, %v43
  %v46 = vsub.f32 %v44, %v45
  %v47 = vmax.f32 %v46, 0.0
  %v48 = vadd.f32 %v47, 1e-05
  %v49 = vrsqrt.pop %v48
  %v50 = vmul.f32 %v49, %v48
  %v51 = vmul.f32 %v50, %v49
  %v52 = vmul.f32 0.5, %v51
  %v53 = vsub.f32 1.5, %v52
  %v54 = vmul.f32 %v49, %v53
  %vm55 = vweird.f32 %v48
  %vm56 = vweird.f32 %v49
  %vm57 = vmor %vm55, %vm56
  %v58 = vsel %vm57, %v49, %v54
  %v59 = vld [vmem:[%s1] sm:$0x1]
  %v60 = vmul.f32 %v58, %v59
  %v61 = vld [vmem:[%s2] sm:$0x1]
  %v62 = vmul.f32 %v43, %v60
  %v63 = vsub.f32 %v61, %v62
  %v64 = vperm.slane %v60, 0
  %v65 = vmul.f32 %v14, %v64
  %v67 = vperm.slane %v63, 0
  %v69 = vadd.f32 %v65, %v67
  %70 = vst [vmem:[%s3] sm:$0xf] %v69
  // Predicated region
  $region14: #{seqbn.1} parent=0 // pred_check
    _
  $region15: #{seqbn.1} parent=0 // pred_check_branch
    %72 = sbr.rel (0) target = $region17
  $region16: #{seqbn.1} parent=0 // pred_region
    _
  $region17: #{seqbn.1} parent=0 // pred_fallthru
    _
  // Predicated region
  $region18: #{seqbn.1} parent=0 // pred_check
    _
  $region19: #{seqbn.1} parent=0 // pred_check_branch
    %74 = sbr.rel (0) target = $region21
  $region20: #{seqbn.1} parent=0 // pred_region
    _
  $region21: #{seqbn.1} parent=0 // pred_fallthru
    _

</llo_original>
